<compile_context>
chip_gen: v6e
topology: v6e:2x2x1
jax: 0.10.0
libtpu: 0.0.40
codegen_flags: <defaults>
</compile_context>

<pallas_src>
import jax
import jax.numpy as jnp
from jax.experimental import pallas as pl
from jax.experimental.pallas import tpu as pltpu


def _conv_sum_kernel(p_ref, w_ref, b_ref, o_ref):
    # p_ref: (K, M)   transposed im2col patches of the pre-summed input
    # w_ref: (Cout, K) weight, rows ordered (kh, kw, cin)
    # b_ref: (Cout, 1) holding 3 * bias (one epilogue add, broadcast on lanes)
    # o_ref: (Cout, M) lane-dense output
    o_ref[...] = (
        jnp.dot(w_ref[...], p_ref[...], preferred_element_type=jnp.float32)
        + b_ref[...]
    ).astype(o_ref.dtype)


def _im2col_t(s_nchw, kh, kw):
    """NCHW -> transposed im2col (KH*KW*Cin, N*OH*OW); valid conv, stride 1."""
    n, c, h, w = s_nchw.shape
    oh, ow = h - kh + 1, w - kw + 1
    cols = [s_nchw[:, :, i:i + oh, j:j + ow]          # each (N, C, OH, OW)
            for i in range(kh) for j in range(kw)]
    pat = jnp.stack(cols, axis=0)                     # (KH*KW, N, C, OH, OW)
    pat = jnp.transpose(pat, (0, 2, 1, 3, 4))         # (KH*KW, C, N, OH, OW)
    return pat.reshape(kh * kw * c, n * oh * ow), (n, oh, ow)


def conv2d_multi_input_sum(x, y, z, weight, bias):
    """conv2d(x) + conv2d(y) + conv2d(z) in PyTorch NCHW conventions.

    x, y, z: (N, Cin, H, W); weight: (Cout, Cin, KH, KW); bias: (Cout,).
    Returns (N, Cout, OH, OW), OH = H-KH+1, OW = W-KW+1.
    """
    cout, cin, kh, kw = weight.shape

    # Linearity of convolution: sum inputs once (cheap elementwise XLA op on
    # the raw 20 KB tensors), then a single conv with bias scaled by 3.
    s = x + y + z
    p, (n, oh, ow) = _im2col_t(s, kh, kw)             # (K, M)
    k, m = p.shape

    # Weight rows ordered (kh, kw, cin) to match im2col row order:
    # (Cout, Cin, KH, KW) -> (Cout, KH, KW, Cin) -> (Cout, KH*KW*Cin)
    wm = jnp.transpose(weight, (0, 2, 3, 1)).reshape(cout, kh * kw * cin)
    bm = (3.0 * bias).reshape(cout, 1).astype(jnp.float32)

    # Everything fits trivially in VMEM at this size, so a single full-array
    # block is used.  TODO(synk): at scaled N/H/W, tile the M (lane) axis with
    # a "parallel" grid dimension to stay under VMEM (esp. v7x) and use both
    # TensorCores.
    out_cm = pl.pallas_call(
        _conv_sum_kernel,
        out_shape=jax.ShapeDtypeStruct((cout, m), jnp.float32),
        grid=(1,),
        in_specs=[
            pl.BlockSpec((k, m), lambda i: (0, 0)),
            pl.BlockSpec((cout, k), lambda i: (0, 0)),
            pl.BlockSpec((cout, 1), lambda i: (0, 0)),
        ],
        out_specs=pl.BlockSpec((cout, m), lambda i: (0, 0)),
        compiler_params=pltpu.CompilerParams(
            dimension_semantics=("arbitrary",)),
    )(p, wm, bm)

    out = out_cm.reshape(cout, n, oh, ow)             # (Cout, N, OH, OW)
    return jnp.transpose(out, (1, 0, 2, 3))           # back to NCHW


if __name__ == "__main__":
    key = jax.random.PRNGKey(0)
    n, cin, h, w = 2, 10, 16, 16
    cout, ksize = 16, 3

    kx, ky, kz, kwt, kb = jax.random.split(key, 5)
    x = jax.random.normal(kx, (n, cin, h, w), jnp.float32)
    y = jax.random.normal(ky, (n, cin, h, w), jnp.float32)
    z = jax.random.normal(kz, (n, cin, h, w), jnp.float32)

    # Deterministic params, PyTorch-style U(-1/sqrt(fan_in), 1/sqrt(fan_in)).
    fan_in = cin * ksize * ksize
    bound = 1.0 / (fan_in ** 0.5)
    weight = jax.random.uniform(kwt, (cout, cin, ksize, ksize), jnp.float32,
                                -bound, bound)
    bias = jax.random.uniform(kb, (cout,), jnp.float32, -bound, bound)

    out = conv2d_multi_input_sum(x, y, z, weight, bias)
    out = jax.block_until_ready(out)

    # Reference check against XLA's conv (three separate biased convs summed).
    def conv_ref(a):
        return jax.lax.conv_general_dilated(
            a, weight, (1, 1), "VALID",
            dimension_numbers=("NCHW", "OIHW", "NCHW")
        ) + bias[None, :, None, None]

    ref = conv_ref(x) + conv_ref(y) + conv_ref(z)
    assert out.shape == (n, cout, h - ksize + 1, w - ksize + 1)
    assert jnp.allclose(out, ref, atol=1e-4, rtol=1e-4)
    print("KERNEL_OK")
</pallas_src>

<mosaic_0001>
module attributes {stable_mosaic.version = 11 : i64} {
  func.func @_conv_sum_kernel(%arg0: i32, %arg1: memref<90x392xf32, #tpu.memory_space<vmem>>, %arg2: memref<16x90xf32, #tpu.memory_space<vmem>>, %arg3: memref<16x1xf32, #tpu.memory_space<vmem>>, %arg4: memref<16x392xf32, #tpu.memory_space<vmem>>) attributes {dimension_semantics = [#tpu.dimension_semantics<arbitrary>], iteration_bounds = array<i64: 1>, scalar_prefetch = 0 : i64, scratch_operands = 0 : i64, tpu.core_type = #tpu.core_type<tc>, window_params = [{pipeline_mode = #tpu.pipeline_mode<synchronous>, transform_indices = @transform_0, window_bounds = array<i64: 90, 392>}, {pipeline_mode = #tpu.pipeline_mode<synchronous>, transform_indices = @transform_1, window_bounds = array<i64: 16, 90>}, {pipeline_mode = #tpu.pipeline_mode<synchronous>, transform_indices = @transform_2, window_bounds = array<i64: 16, 1>}, {pipeline_mode = #tpu.pipeline_mode<synchronous>, transform_indices = @transform_3, window_bounds = array<i64: 16, 392>}]} {
    %c0 = arith.constant 0 : index
    %c0_0 = arith.constant 0 : index
    %0 = vector.load %arg2[%c0, %c0_0] : memref<16x90xf32, #tpu.memory_space<vmem>>, vector<16x90xf32>
    %c0_1 = arith.constant 0 : index
    %c0_2 = arith.constant 0 : index
    %1 = vector.load %arg1[%c0_1, %c0_2] : memref<90x392xf32, #tpu.memory_space<vmem>>, vector<90x392xf32>
    %cst = arith.constant dense<0.000000e+00> : vector<16x392xf32>
    %2 = tpu.matmul %0, %1, %cst {dimension_numbers = #tpu.dot_dimension_numbers<[1], [0], [0], [1], [0, 0, 1, 1], [], []>} : vector<16x90xf32>, vector<90x392xf32>, vector<16x392xf32> -> vector<16x392xf32>
    %c0_3 = arith.constant 0 : index
    %c0_4 = arith.constant 0 : index
    %3 = vector.load %arg3[%c0_3, %c0_4] : memref<16x1xf32, #tpu.memory_space<vmem>>, vector<16x1xf32>
    %4 = vector.broadcast %3 : vector<16x1xf32> to vector<16x392xf32>
    %5 = arith.addf %2, %4 : vector<16x392xf32>
    %c0_5 = arith.constant 0 : index
    %c0_6 = arith.constant 0 : index
    %6 = vector.load %arg4[%c0_5, %c0_6] : memref<16x392xf32, #tpu.memory_space<vmem>>, vector<16x392xf32>
    tpu.vector_store %arg4[%c0_5, %c0_6], %5 {strides = array<i32>} : memref<16x392xf32, #tpu.memory_space<vmem>>, vector<16x392xf32>,
    return
  }
  func.func @transform_0(%arg0: i32) -> (i32, i32) {
    %c0_i32 = arith.constant 0 : i32
    %c0_i32_0 = arith.constant 0 : i32
    %c0_i32_1 = arith.constant 0 : i32
    return %c0_i32, %c0_i32_0 : i32, i32
  }
  func.func @transform_1(%arg0: i32) -> (i32, i32) {
    %c0_i32 = arith.constant 0 : i32
    %c0_i32_0 = arith.constant 0 : i32
    %c0_i32_1 = arith.constant 0 : i32
    return %c0_i32, %c0_i32_0 : i32, i32
  }
  func.func @transform_2(%arg0: i32) -> (i32, i32) {
    %c0_i32 = arith.constant 0 : i32
    %c0_i32_0 = arith.constant 0 : i32
    %c0_i32_1 = arith.constant 0 : i32
    return %c0_i32, %c0_i32_0 : i32, i32
  }
  func.func @transform_3(%arg0: i32) -> (i32, i32) {
    %c0_i32 = arith.constant 0 : i32
    %c0_i32_0 = arith.constant 0 : i32
    %c0_i32_1 = arith.constant 0 : i32
    return %c0_i32, %c0_i32_0 : i32, i32
  }
}

</mosaic_0001>

<llo_original>
// kernel: tpu_custom_call.1
$region0: #{tpu_custom_call.1}
  #allocation0 [shape = 'u32[]', space=smem, size = 0x4, offset = 0x4, fixed_abs, tag = 'smem constant byte address 0x4 - core index']
  #allocation1 [shape = 'u32[144,128]{1,0:T(1,128)}', space=vmem, size = 0x12000, scoped, tag = 'internal scratch']
  %s0 = inlined_call_operand.hbm [shape: f32[90,392], index: 0, kind: input, shape index: {}]
  %s1 = inlined_call_operand.vmem [shape: f32[16,90], index: 1, kind: input, shape index: {}]
  %s2 = inlined_call_operand.vmem [shape: f32[16,1], index: 2, kind: input, shape index: {}]
  %s3 = inlined_call_operand.hbm [shape: f32[16,392], index: 3, kind: output, shape index: {}]
  %s4 = sld [smem:[#allocation0]]
  $region26: #{tpu_custom_call.1} parent=0
    _
  %s6 = ssub.s32 1, %s4
  %s7 = scalar_select 0, %s6, %s4
  $region1: #{tpu_custom_call.1} parent=0
    #allocation2 [shape = 'u8[196608]{0}', space=vmem, size = 0x30000, scoped, tag = 'input window, operand 0, single buffered']
    #allocation3 [shape = 's32[1]{0}', space=sflag, size = 0x4, scoped, tag = 'scoped memory for tpu_custom_call.1']
    #allocation4 [shape = 's32[1]{0}', space=sflag, size = 0x4, scoped, tag = 'scoped memory for tpu_custom_call.1']
    #allocation5 [shape = 'u8[32768]{0}', space=vmem, size = 0x8000, scoped, tag = 'output window, operand 0, single buffered']
    %8 = vsyncpa [#allocation3], 0
    %9 = vsyncpa [#allocation4], 0
    // Predicated region
    $region2: #{tpu_custom_call.1} parent=1 // pred_check
      _
    $region3: #{tpu_custom_call.1} parent=1 // pred_check_branch
      %11 = sbr.rel (0) target = $region5
    $region4: #{tpu_custom_call.1} parent=1 // pred_region
      %s13 = ssub.s32 6144, 6144
      %14 = vsyncadd [#allocation3], %s13
      %s15 = sshll.u32 [#allocation2], 4
      %s16 = int_to_ptr.vmem [resolvable:$true] %s15
      %21 = dma.hbm_to_vmem [thread:$0]  %s0, 6144, %s16, [#allocation3], 512, 512, 32
    $region5: #{tpu_custom_call.1} parent=1 // pred_fallthru
      _
    // Predicated region
    $region6: #{tpu_custom_call.1} parent=1 // pred_check
      _
    $region7: #{tpu_custom_call.1} parent=1 // pred_check_branch
      %23 = sbr.rel (0) target = $region9
    $region8: #{tpu_custom_call.1} parent=1 // pred_region
      _
    $region9: #{tpu_custom_call.1} parent=1 // pred_fallthru
      _
    // Predicated region
    $region10: #{tpu_custom_call.1} parent=1 // pred_check
      _
    $region11: #{tpu_custom_call.1} parent=1 // pred_check_branch
      %25 = sbr.rel (0) target = $region13
    $region12: #{tpu_custom_call.1} parent=1 // pred_region
      _
    $region13: #{tpu_custom_call.1} parent=1 // pred_fallthru
      _
    // Predicated region
    $region14: #{tpu_custom_call.1} parent=1 // pred_check
      _
    $region15: #{tpu_custom_call.1} parent=1 // pred_check_branch
      %27 = sbr.rel (0) target = $region17
    $region16: #{tpu_custom_call.1} parent=1 // pred_region
      %28 = dma.done [#allocation3], 6144
    $region17: #{tpu_custom_call.1} parent=1 // pred_fallthru
      _
    %v29 = vld [vmem:[%s1] sm:$0xff]
    %v30 = vld [vmem:[%s1 + $0x8] sm:$0xff]
    %v31 = vld [vmem:[#allocation2] sm:$0xff]
    %v32 = vld [vmem:[#allocation2 + $0x8] sm:$0xff]
    %v33 = vld [vmem:[#allocation2 + $0x10] sm:$0xff]
    %v34 = vld [vmem:[#allocation2 + $0x18] sm:$0xff]
    %v35 = vld [vmem:[#allocation2 + $0x20] sm:$0xff]
    %v36 = vld [vmem:[#allocation2 + $0x28] sm:$0xff]
    %v37 = vld [vmem:[#allocation2 + $0x30] sm:$0xff]
    %v38 = vld [vmem:[#allocation2 + $0x38] sm:$0xff]
    %v39 = vld [vmem:[#allocation2 + $0x40] sm:$0xff]
    %v40 = vld [vmem:[#allocation2 + $0x48] sm:$0xff]
    %v41 = vld [vmem:[#allocation2 + $0x50] sm:$0xff]
    %v42 = vld [vmem:[#allocation2 + $0x58] sm:$0xff]
    %v43 = vld [vmem:[#allocation2 + $0x60] sm:$0xff]
    %v44 = vld [vmem:[#allocation2 + $0x68] sm:$0xff]
    %v45 = vld [vmem:[#allocation2 + $0x70] sm:$0xff]
    %v46 = vld [vmem:[#allocation2 + $0x78] sm:$0xff]
    %v47 = vld [vmem:[#allocation2 + $0x80] sm:$0xff]
    %v48 = vld [vmem:[#allocation2 + $0x88] sm:$0xff]
    %v49 = vld [vmem:[#allocation2 + $0x90] sm:$0xff]
    %v50 = vld [vmem:[#allocation2 + $0x98] sm:$0xff]
    %v51 = vld [vmem:[#allocation2 + $0xa0] sm:$0xff]
    %v52 = vld [vmem:[#allocation2 + $0xa8] sm:$0xff]
    %v53 = vld [vmem:[#allocation2 + $0xb0] sm:$0xff]
    %v54 = vld [vmem:[#allocation2 + $0xb8] sm:$0xff]
    %v55 = vld [vmem:[#allocation2 + $0xc0] sm:$0xff]
    %v56 = vld [vmem:[#allocation2 + $0xc8] sm:$0xff]
    %v57 = vld [vmem:[#allocation2 + $0xd0] sm:$0xff]
    %v58 = vld [vmem:[#allocation2 + $0xd8] sm:$0xff]
    %v59 = vld [vmem:[#allocation2 + $0xe0] sm:$0xff]
    %v60 = vld [vmem:[#allocation2 + $0xe8] sm:$0xff]
    %v61 = vld [vmem:[#allocation2 + $0xf0] sm:$0xff]
    %v62 = vld [vmem:[#allocation2 + $0xf8] sm:$0xff]
    %v63 = vld [vmem:[#allocation2 + $0x100] sm:$0xff]
    %v64 = vld [vmem:[#allocation2 + $0x108] sm:$0xff]
    %v65 = vld [vmem:[#allocation2 + $0x110] sm:$0xff]
    %v66 = vld [vmem:[#allocation2 + $0x118] sm:$0xff]
    %v67 = vld [vmem:[#allocation2 + $0x120] sm:$0xff]
    %v68 = vld [vmem:[#allocation2 + $0x128] sm:$0xff]
    %v69 = vld [vmem:[#allocation2 + $0x130] sm:$0xff]
    %v70 = vld [vmem:[#allocation2 + $0x138] sm:$0xff]
    %v71 = vld [vmem:[#allocation2 + $0x140] sm:$0xff]
    %v72 = vld [vmem:[#allocation2 + $0x148] sm:$0xff]
    %v73 = vld [vmem:[#allocation2 + $0x150] sm:$0xff]
    %v74 = vld [vmem:[#allocation2 + $0x158] sm:$0xff]
    %v75 = vld [vmem:[#allocation2 + $0x160] sm:$0x3]
    %v76 = vld [vmem:[#allocation2 + $0x168] sm:$0x3]
    %v77 = vld [vmem:[#allocation2 + $0x170] sm:$0x3]
    %v78 = vld [vmem:[#allocation2 + $0x178] sm:$0x3]
    %v79 = vld [vmem:[%s2] sm:$0xff]
    %v80 = vld [vmem:[%s2 + $0x8] sm:$0xff]
    %82 = vset.pattern.permute.xlu0 0
    %83 = vperm.xlu0 %82, %v79
    %v84 = vpop.permute.xlu0 %83
    %87 = vset.pattern.permute.xlu0 0
    %88 = vperm.xlu0 %87, %v80
    %v89 = vpop.permute.xlu0 %88
    %vm91 = vcmask 736256
    %v93 = vsel %vm91, %v29, 0
    %v96 = vsel %vm91, %v30, 0
    %vm98 = vcmask 1041408
    %v100 = vsel %vm98, %v75, 0
    %v103 = vsel %vm98, %v76, 0
    %v106 = vsel %vm98, %v77, 0
    %v109 = vsel %vm98, %v78, 0
    %111 = vmatprep.subr.mxu0 0.0
    %112 = vmatpush1.msra.mxu0 0.0
    %113 = vmatprep.subr.mxu0 0.0
    %114 = vmatpush1.msra.mxu0 0.0
    %115 = vmatprep.subr.mxu0 0.0
    %116 = vmatpush1.msra.mxu0 0.0
    %117 = vmatprep.subr.mxu0 0.0
    %118 = vmatpush1.msra.mxu0 0.0
    %119 = vmatprep.subr.mxu0 %v103
    %120 = vmatpush1.msra.mxu0 %v100
    %121 = vmatprep.subr.mxu0 %v72
    %122 = vmatpush1.msra.mxu0 %v71
    %123 = vmatprep.subr.mxu0 %v68
    %124 = vmatpush1.msra.mxu0 %v67
    %125 = vmatprep.subr.mxu0 %v64
    %126 = vmatpush1.msra.mxu0 %v63
    %127 = vmatprep.subr.mxu0 %v60
    %128 = vmatpush1.msra.mxu0 %v59
    %129 = vmatprep.subr.mxu0 %v56
    %130 = vmatpush1.msra.mxu0 %v55
    %131 = vmatprep.subr.mxu0 %v52
    %132 = vmatpush1.msra.mxu0 %v51
    %133 = vmatprep.subr.mxu0 %v48
    %134 = vmatpush1.msra.mxu0 %v47
    %135 = vmatprep.subr.mxu0 %v44
    %136 = vmatpush1.msra.mxu0 %v43
    %137 = vmatprep.subr.mxu0 %v40
    %138 = vmatpush1.msra.mxu0 %v39
    %139 = vmatprep.subr.mxu0 %v36
    %140 = vmatpush1.msra.mxu0 %v35
    %141 = vmatprep.subr.mxu0 %v32
    %142 = vmatpush1.msra.mxu0 %v31
    %143 = vmatprep.subr.mxu0 0.0
    %144 = vmatpush2.msra.mxu0 0.0
    %145 = vmatprep.subr.mxu0 0.0
    %146 = vmatpush2.msra.mxu0 0.0
    %147 = vmatprep.subr.mxu0 0.0
    %148 = vmatpush2.msra.mxu0 0.0
    %149 = vmatprep.subr.mxu0 0.0
    %150 = vmatpush2.msra.mxu0 0.0
    %151 = vmatprep.subr.mxu0 0.0
    %152 = vmatpush2.msra.mxu0 0.0
    %153 = vmatprep.subr.mxu0 0.0
    %154 = vmatpush2.msra.mxu0 0.0
    %155 = vmatprep.subr.mxu0 0.0
    %156 = vmatpush2.msra.mxu0 0.0
    %157 = vmatprep.subr.mxu0 0.0
    %158 = vmatpush2.msra.mxu0 0.0
    %159 = vmatprep.subr.mxu0 0.0
    %160 = vmatpush2.msra.mxu0 0.0
    %161 = vmatprep.subr.mxu0 0.0
    %162 = vmatpush2.msra.mxu0 0.0
    %163 = vmatprep.subr.mxu0 0.0
    %164 = vmatpush2.msra.mxu0 0.0
    %165 = vmatprep.subr.mxu0 0.0
    %166 = vmatpush2.msra.mxu0 0.0
    %167 = vmatprep.subr.mxu0 0.0
    %168 = vmatpush2.msra.mxu0 0.0
    %169 = vmatprep.subr.mxu0 0.0
    %170 = vmatpush2.msra.mxu0 0.0
    %171 = vmatprep.subr.mxu0 0.0
    %172 = vmatpush2.msra.mxu0 0.0
    %173 = vmatprep.subr.mxu0 0.0
    %174 = vmatpush2.msra.mxu0 0.0
    %175 = vmatprep.mubr.f32.mxu0 0.0
    %176 = vmatmul.mubr.f32.gmra.mxu0 %v93
    %v177 = vpop.f32.mrf.mxu0
    %v178 = vadd.f32 %v84, %v177
    %v179 = vpop.f32.mrf.mxu0
    %v180 = vadd.f32 %v84, %v179
    %181 = vmatprep.mubr.f32.mxu0 0.0
    %182 = vmatmul.mubr.f32.gmra.mxu0 %v96
    %v183 = vpop.f32.mrf.mxu0
    %v184 = vadd.f32 %v89, %v183
    %v185 = vpop.f32.mrf.mxu0
    %v186 = vadd.f32 %v89, %v185
    %187 = vdwg.mxu0
    %188 = vmatprep.subr.mxu0 0.0
    %189 = vmatpush1.msra.mxu0 0.0
    %190 = vmatprep.subr.mxu0 0.0
    %191 = vmatpush1.msra.mxu0 0.0
    %192 = vmatprep.subr.mxu0 0.0
    %193 = vmatpush1.msra.mxu0 0.0
    %194 = vmatprep.subr.mxu0 0.0
    %195 = vmatpush1.msra.mxu0 0.0
    %196 = vmatprep.subr.mxu0 %v109
    %197 = vmatpush1.msra.mxu0 %v106
    %198 = vmatprep.subr.mxu0 %v74
    %199 = vmatpush1.msra.mxu0 %v73
    %200 = vmatprep.subr.mxu0 %v70
    %201 = vmatpush1.msra.mxu0 %v69
    %202 = vmatprep.subr.mxu0 %v66
    %203 = vmatpush1.msra.mxu0 %v65
    %204 = vmatprep.subr.mxu0 %v62
    %205 = vmatpush1.msra.mxu0 %v61
    %206 = vmatprep.subr.mxu0 %v58
    %207 = vmatpush1.msra.mxu0 %v57
    %208 = vmatprep.subr.mxu0 %v54
    %209 = vmatpush1.msra.mxu0 %v53
    %210 = vmatprep.subr.mxu0 %v50
    %211 = vmatpush1.msra.mxu0 %v49
    %212 = vmatprep.subr.mxu0 %v46
    %213 = vmatpush1.msra.mxu0 %v45
    %214 = vmatprep.subr.mxu0 %v42
    %215 = vmatpush1.msra.mxu0 %v41
    %216 = vmatprep.subr.mxu0 %v38
    %217 = vmatpush1.msra.mxu0 %v37
    %218 = vmatprep.subr.mxu0 %v34
    %219 = vmatpush1.msra.mxu0 %v33
    %220 = vmatprep.subr.mxu0 0.0
    %221 = vmatpush2.msra.mxu0 0.0
    %222 = vmatprep.subr.mxu0 0.0
    %223 = vmatpush2.msra.mxu0 0.0
    %224 = vmatprep.subr.mxu0 0.0
    %225 = vmatpush2.msra.mxu0 0.0
    %226 = vmatprep.subr.mxu0 0.0
    %227 = vmatpush2.msra.mxu0 0.0
    %228 = vmatprep.subr.mxu0 0.0
    %229 = vmatpush2.msra.mxu0 0.0
    %230 = vmatprep.subr.mxu0 0.0
    %231 = vmatpush2.msra.mxu0 0.0
    %232 = vmatprep.subr.mxu0 0.0
    %233 = vmatpush2.msra.mxu0 0.0
    %234 = vmatprep.subr.mxu0 0.0
    %235 = vmatpush2.msra.mxu0 0.0
    %236 = vmatprep.subr.mxu0 0.0
    %237 = vmatpush2.msra.mxu0 0.0
    %238 = vmatprep.subr.mxu0 0.0
    %239 = vmatpush2.msra.mxu0 0.0
    %240 = vmatprep.subr.mxu0 0.0
    %241 = vmatpush2.msra.mxu0 0.0
    %242 = vmatprep.subr.mxu0 0.0
    %243 = vmatpush2.msra.mxu0 0.0
    %244 = vmatprep.subr.mxu0 0.0
    %245 = vmatpush2.msra.mxu0 0.0
    %246 = vmatprep.subr.mxu0 0.0
    %247 = vmatpush2.msra.mxu0 0.0
    %248 = vmatprep.subr.mxu0 0.0
    %249 = vmatpush2.msra.mxu0 0.0
    %250 = vmatprep.subr.mxu0 0.0
    %251 = vmatpush2.msra.mxu0 0.0
    %252 = vmatprep.mubr.f32.mxu0 0.0
    %253 = vmatmul.mubr.f32.gmra.mxu0 %v93
    %v254 = vpop.f32.mrf.mxu0
    %v255 = vadd.f32 %v84, %v254
    %v256 = vpop.f32.mrf.mxu0
    %v257 = vadd.f32 %v84, %v256
    %258 = vmatprep.mubr.f32.mxu0 0.0
    %259 = vmatmul.mubr.f32.gmra.mxu0 %v96
    %v260 = vpop.f32.mrf.mxu0
    %v261 = vadd.f32 %v89, %v260
    %v262 = vpop.f32.mrf.mxu0
    %v263 = vadd.f32 %v89, %v262
    %264 = vdwg.mxu0
    %265 = vst [vmem:[#allocation5] sm:$0xff] %v178
    %266 = vst [vmem:[#allocation5 + $0x8] sm:$0xff] %v180
    %267 = vst [vmem:[#allocation5 + $0x10] sm:$0xff] %v255
    %vm268 = vcmask 64512
    %269 = vst.msk [vmem:[#allocation5 + $0x18] sm:$0xff] %vm268, %v257
    %270 = vst [vmem:[#allocation5 + $0x20] sm:$0xff] %v184
    %271 = vst [vmem:[#allocation5 + $0x28] sm:$0xff] %v186
    %272 = vst [vmem:[#allocation5 + $0x30] sm:$0xff] %v261
    %273 = vst.msk [vmem:[#allocation5 + $0x38] sm:$0xff] %vm268, %v263
    // Predicated region
    $region18: #{tpu_custom_call.1} parent=1 // pred_check
      _
    $region19: #{tpu_custom_call.1} parent=1 // pred_check_branch
      %275 = sbr.rel (0) target = $region21
    $region20: #{tpu_custom_call.1} parent=1 // pred_region
      %s277 = ssub.s32 1024, 1024
      %278 = vsyncadd [#allocation4], %s277
      %s279 = sshll.u32 [#allocation5], 4
      %s280 = int_to_ptr.vmem [resolvable:$true] %s279
      %285 = dma.vmem_to_hbm [thread:$0]  %s280, 1024, %s3, [#allocation4], 512, 512, 32
    $region21: #{tpu_custom_call.1} parent=1 // pred_fallthru
      _
    // Predicated region
    $region22: #{tpu_custom_call.1} parent=1 // pred_check
      _
    $region23: #{tpu_custom_call.1} parent=1 // pred_check_branch
      %287 = sbr.rel (0) target = $region25
    $region24: #{tpu_custom_call.1} parent=1 // pred_region
      %288 = dma.done [#allocation4], 1024
    $region25: #{tpu_custom_call.1} parent=1 // pred_fallthru
      _
    %289 = vsyncpa [#allocation3], 1
    %290 = vsyncpa [#allocation4], 1

</llo_original>
